<compile_context>
chip_gen: v5e
topology: v5e:2x2
jax: 0.10.0
libtpu: 0.0.40
codegen_flags: <defaults>
</compile_context>

<pallas_src>
import jax
import jax.numpy as jnp
import numpy as np
from jax.experimental import pallas as pl
from jax.experimental.pallas import tpu as pltpu

ORIG_DIM = 6
LIDAR_DIM = 20
PROC_LIDAR_DIM = 20
HIDDEN_DIM = 32
OUTPUT_DIM = 4
NUM_LAYERS = 2
NHEAD = 4                      # numerically irrelevant for seq_len == 1
FOV = 0.35 * np.pi
MAX_DISTANCE = 10.0
LN_EPS = 1e-5
HEAD_PAD = 8                   # head padded to 8 lanes (masked vst, 16x less
                               # writeback than 128); wrapper slices to OUTPUT_DIM
NODE_DIM = ORIG_DIM + HIDDEN_DIM   # [orig(6) | lid padded to HIDDEN] = 38
DATA_DIM = ORIG_DIM + LIDAR_DIM    # 26
ROWS_TARGET = 2048             # target rows (bt*N) per grid step


# ----------------------------- Pallas kernel --------------------------------
def _make_kernel(w_off, b_row, num_layers):
    relu = jax.nn.relu

    def kernel(data_ref, adjt_ref, wslab_ref, bslab_ref, wfc_ref, bfc_ref, out_ref):
        bt, n, _ = data_ref.shape
        rows = bt * n

        def w(name):                       # static 8-aligned slab slice
            off, k = w_off[name]
            return wslab_ref[off:off + k, :]

        def b(name):                       # one (1, HIDDEN) bias/LN row
            r = b_row[name]
            return bslab_ref[r:r + 1, :]

        def mm(a, wname, bname):
            return jnp.dot(a, w(wname), preferred_element_type=jnp.float32) + b(bname)

        def layer_norm(x, gname, bname):
            # one-pass variance: E[x^2] - mu^2 (clamped), single dependency chain
            mu = jnp.mean(x, axis=-1, keepdims=True)
            ms = jnp.mean(x * x, axis=-1, keepdims=True)
            var = jnp.maximum(ms - mu * mu, 0.0)
            return (x - mu) * jax.lax.rsqrt(var + LN_EPS) * b(gname) + b(bname)

        # one input stream; static lane slices (leading-dim reshapes are free)
        xin = data_ref[...]
        orig = xin[:, :, :ORIG_DIM].reshape(rows, ORIG_DIM)
        lidar = xin[:, :, ORIG_DIM:].reshape(rows, LIDAR_DIM)
        adj_t = adjt_ref[...]              # bf16 {0,1}; promoted inside the einsum

        # lidar_fc: Linear -> ReLU -> Linear -> ReLU. wl2/bl2 are zero-padded
        # from PROC_LIDAR_DIM to HIDDEN columns, so lid's tail columns are
        # exact zeros (no lane slicing needed before the concat).
        h = relu(mm(lidar, "wl1", "bl1"))
        lid = relu(mm(h, "wl2", "bl2"))                    # (rows, HIDDEN)

        node = jnp.concatenate([orig, lid], axis=-1)       # (rows, NODE_DIM)

        def gin(x_flat, width, wa, ba, wb, bb):
            # GINConv: nn((1+eps)*x + sum_{i->j} x_i), eps = 0, then outer ReLU.
            x_b = x_flat.reshape(bt, n, width)
            agg = jnp.einsum("bij,bjf->bif", adj_t, x_b,
                             preferred_element_type=jnp.float32)
            g = (x_b + agg).reshape(rows, width)
            return relu(mm(relu(mm(g, wa, ba)), wb, bb))

        h1 = gin(node, NODE_DIM, "wg1a", "bg1a", "wg1b", "bg1b")
        h2 = gin(h1, HIDDEN_DIM, "wg2a", "bg2a", "wg2b", "bg2b")

        # TransformerEncoder (post-norm, seq_len == 1, dropout = identity):
        # softmax(QK^T) == 1 so attention == out_proj(V(x)), pre-fused to wvo/bvo.
        hcur = h2
        for l in range(num_layers):
            attn = mm(hcur, f"wvo{l}", f"bvo{l}")
            hcur = layer_norm(hcur + attn, f"ln1g{l}", f"ln1b{l}")
            ff = mm(relu(mm(hcur, f"wf1{l}", f"bf1{l}")), f"wf2{l}", f"bf2{l}")
            hcur = layer_norm(hcur + ff, f"ln2g{l}", f"ln2b{l}")

        # head padded to HEAD_PAD lanes (16x less writeback than 128-lane pad)
        logits = jnp.dot(hcur, wfc_ref[...],
                         preferred_element_type=jnp.float32) + bfc_ref[...]
        out_ref[...] = logits.reshape(bt, n, HEAD_PAD).astype(out_ref.dtype)

    return kernel


# ------------------------------ JAX glue -------------------------------------
def build_adjacency_t(data, fov=FOV, max_distance=MAX_DISTANCE):
    """Dense equivalent of batch_from_dense_to_ptg.

    adj_t[b, j, i] == 1 iff there is an edge i -> j, so the GIN sum-aggregation
    at node j is (adj_t @ x)[j]. Matches the PyTorch code: FOV is tested against
    the inter-agent bearing only (no heading). Squared distance avoids sqrt(0).
    """
    positions = data[..., 0:2]
    _, N, _ = data.shape
    px, py = positions[..., 0], positions[..., 1]
    dx = px[:, :, None] - px[:, None, :]
    dy = py[:, :, None] - py[:, None, :]
    dist2 = dx * dx + dy * dy
    ang = jnp.arctan2(dy, dx)
    ang = (ang + jnp.pi) % (2.0 * jnp.pi) - jnp.pi
    fov_mask = (jnp.abs(ang) <= fov) & (dist2 <= max_distance * max_distance)
    not_self = ~jnp.eye(N, dtype=bool)[None]
    final_mask = not_self & fov_mask
    return jnp.transpose(final_mask, (0, 2, 1)).astype(jnp.float32)


def _round_up(x, m):
    return -(-x // m) * m


def _tpu_caps():
    """(is_multicore_v7, vmem_limit_bytes or None) from the device kind."""
    kind = ""
    try:
        kind = jax.devices()[0].device_kind.lower()
    except Exception:
        pass
    is_v7 = "v7" in kind
    if is_v7:
        vmem = 44 << 20          # 64 MiB physical: big tile + headroom
    elif ("v5" in kind) or ("v6" in kind):
        vmem = 64 << 20          # raise 16/32 MiB scoped default (128 MiB physical)
    else:
        vmem = None              # unknown generation: keep compiler default
    return is_v7, vmem


def _pack_params(params):
    """Pack parameters into slabs; fuse V·out_proj; pad the head to HEAD_PAD."""
    H = HIDDEN_DIM
    hp = jax.lax.Precision.HIGHEST
    num_layers = params["wv"].shape[0]

    def pad_cols(a, width=H):
        return jnp.pad(a, ((0, 0), (0, width - a.shape[1])))

    w_entries = [
        ("wl1", pad_cols(params["wl1"])),
        ("wl2", pad_cols(params["wl2"])),
        # node features in-kernel are [orig(6) | lid padded to HIDDEN]; pad the
        # GIN-1 first-layer weight with zero rows for the padded lid tail.
        ("wg1a", jnp.pad(pad_cols(params["wg1a"]),
                         ((0, NODE_DIM - params["wg1a"].shape[0]), (0, 0)))),
        ("wg1b", pad_cols(params["wg1b"])),
        ("wg2a", pad_cols(params["wg2a"])),
        ("wg2b", pad_cols(params["wg2b"])),
    ]
    b_entries = [
        ("bl1", pad_cols(params["bl1"])),
        ("bl2", pad_cols(params["bl2"])),
        ("bg1a", pad_cols(params["bg1a"])),
        ("bg1b", pad_cols(params["bg1b"])),
        ("bg2a", pad_cols(params["bg2a"])),
        ("bg2b", pad_cols(params["bg2b"])),
    ]
    for l in range(num_layers):
        wvo = jnp.matmul(params["wv"][l], params["wo"][l], precision=hp)
        bvo = jnp.matmul(params["bv"][l], params["wo"][l], precision=hp) + params["bo"][l]
        w_entries += [(f"wvo{l}", pad_cols(wvo)),
                      (f"wf1{l}", pad_cols(params["wf1"][l])),
                      (f"wf2{l}", pad_cols(params["wf2"][l]))]
        b_entries += [(f"bvo{l}", pad_cols(bvo)),
                      (f"ln1g{l}", pad_cols(params["ln1g"][l])),
                      (f"ln1b{l}", pad_cols(params["ln1b"][l])),
                      (f"bf1{l}", pad_cols(params["bf1"][l])),
                      (f"bf2{l}", pad_cols(params["bf2"][l])),
                      (f"ln2g{l}", pad_cols(params["ln2g"][l])),
                      (f"ln2b{l}", pad_cols(params["ln2b"][l]))]

    w_off, blocks, off = {}, [], 0
    for name, wmat in w_entries:            # 8-aligned row offsets -> clean slices
        k = wmat.shape[0]
        alloc = _round_up(k, 8)
        w_off[name] = (off, k)
        blocks.append(jnp.pad(wmat, ((0, alloc - k), (0, 0))))
        off += alloc
    wslab = jnp.concatenate(blocks, axis=0)

    b_row = {name: i for i, (name, _) in enumerate(b_entries)}
    bslab = jnp.concatenate([bvec for _, bvec in b_entries], axis=0)

    out_dim = params["wfc"].shape[1]
    wfc_pad = jnp.pad(params["wfc"], ((0, 0), (0, HEAD_PAD - out_dim)))
    bfc_pad = jnp.pad(params["bfc"], ((0, 0), (0, HEAD_PAD - out_dim)))
    return wslab, w_off, bslab, b_row, wfc_pad, bfc_pad, num_layers


def gin_policy_forward(data, params, block_batch=None):
    B, N, F = data.shape
    assert F == DATA_DIM
    out_dim = params["wfc"].shape[1]

    # bfloat16 is exact for the {0,1} mask and halves the only N^2-sized stream.
    adj_t = build_adjacency_t(data).astype(jnp.bfloat16)

    wslab, w_off, bslab, b_row, wfc_pad, bfc_pad, num_layers = _pack_params(params)

    is_v7, vmem_limit = _tpu_caps()

    # Batch tiling: target ~ROWS_TARGET rows on the matmul M axis per grid step
    # (per-grid-step overhead ~0.35 us would dominate small tiles).
    if block_batch is None:
        bt = max(1, min(B, pl.cdiv(ROWS_TARGET, N)))
        if is_v7 and B > 1 and pl.cdiv(B, bt) < 2:
            bt = pl.cdiv(B, 2)                   # use both TensorCores on v7x
    else:
        bt = block_batch
    grid = pl.cdiv(B, bt)
    b_pad = grid * bt
    data_in = data
    if b_pad != B:                               # pad ragged batch tail with zeros
        pad = ((0, b_pad - B), (0, 0), (0, 0))
        data_in = jnp.pad(data_in, pad)
        adj_t = jnp.pad(adj_t, pad)

    kernel = _make_kernel(w_off, b_row, num_layers)
    const2 = lambda b: (0, 0)

    # advisory cost estimate for XLA's scheduler
    rows_total = b_pad * N
    dense_kn = (LIDAR_DIM * HIDDEN_DIM + HIDDEN_DIM * HIDDEN_DIM        # lidar MLP
                + NODE_DIM * HIDDEN_DIM + HIDDEN_DIM * HIDDEN_DIM       # GIN 1
                + 2 * HIDDEN_DIM * HIDDEN_DIM                           # GIN 2
                + num_layers * 3 * HIDDEN_DIM * HIDDEN_DIM              # transformer
                + HIDDEN_DIM * HEAD_PAD)                                # head
    flops = int(2 * rows_total * dense_kn
                + 2 * b_pad * N * N * (NODE_DIM + HIDDEN_DIM))          # GIN aggregations
    bytes_accessed = int(rows_total * DATA_DIM * 4 + b_pad * N * N * 2
                         + rows_total * HEAD_PAD * 4
                         + wslab.size * 4 + bslab.size * 4)
    cost = pl.CostEstimate(flops=flops,
                           transcendentals=int(rows_total * 2 * num_layers),
                           bytes_accessed=bytes_accessed)

    out = pl.pallas_call(
        kernel,
        out_shape=jax.ShapeDtypeStruct((b_pad, N, HEAD_PAD), jnp.float32),
        grid_spec=pltpu.PrefetchScalarGridSpec(
            num_scalar_prefetch=0,
            grid=(grid,),
            in_specs=[
                pl.BlockSpec((bt, N, DATA_DIM), lambda b: (b, 0, 0)),
                pl.BlockSpec((bt, N, N), lambda b: (b, 0, 0)),
                pl.BlockSpec(wslab.shape, const2),
                pl.BlockSpec(bslab.shape, const2),
                pl.BlockSpec(wfc_pad.shape, const2),
                pl.BlockSpec(bfc_pad.shape, const2),
            ],
            out_specs=pl.BlockSpec((bt, N, HEAD_PAD), lambda b: (b, 0, 0)),
        ),
        compiler_params=pltpu.CompilerParams(
            dimension_semantics=("parallel",),
            vmem_limit_bytes=vmem_limit),
        cost_estimate=cost,
    )(data_in, adj_t, wslab, bslab, wfc_pad, bfc_pad)

    return out[:B, :, :out_dim]


# --------------------------- params & pure-JAX reference ----------------------
def init_params(key, hidden=HIDDEN_DIM, out_dim=OUTPUT_DIM, num_layers=NUM_LAYERS,
                lidar_dim=LIDAR_DIM, proc_lidar=PROC_LIDAR_DIM):
    keys = iter(jax.random.split(key, 128))

    def lin(i, o):
        w = jax.random.normal(next(keys), (i, o), jnp.float32) / np.sqrt(i)
        b = 0.1 * jax.random.normal(next(keys), (1, o), jnp.float32)
        return w, b

    def lin_stack(i, o, n):
        ws, bs = zip(*[lin(i, o) for _ in range(n)])
        return jnp.stack(ws), jnp.stack(bs)

    p = {}
    p["wl1"], p["bl1"] = lin(lidar_dim, hidden)
    p["wl2"], p["bl2"] = lin(hidden, proc_lidar)
    p["wg1a"], p["bg1a"] = lin(proc_lidar + ORIG_DIM, hidden)
    p["wg1b"], p["bg1b"] = lin(hidden, hidden)
    p["wg2a"], p["bg2a"] = lin(hidden, hidden)
    p["wg2b"], p["bg2b"] = lin(hidden, hidden)
    # seq_len == 1: only attention V and out_proj matter numerically (Q/K unused).
    p["wv"], p["bv"] = lin_stack(hidden, hidden, num_layers)
    p["wo"], p["bo"] = lin_stack(hidden, hidden, num_layers)
    p["ln1g"] = jnp.ones((num_layers, 1, hidden), jnp.float32)
    p["ln1b"] = jnp.zeros((num_layers, 1, hidden), jnp.float32)
    p["wf1"], p["bf1"] = lin_stack(hidden, hidden, num_layers)  # dim_feedforward == hidden
    p["wf2"], p["bf2"] = lin_stack(hidden, hidden, num_layers)
    p["ln2g"] = jnp.ones((num_layers, 1, hidden), jnp.float32)
    p["ln2b"] = jnp.zeros((num_layers, 1, hidden), jnp.float32)
    p["wfc"], p["bfc"] = lin(hidden, out_dim)
    return p


def reference_forward(data, params):
    """Pure-JAX reference mirroring the PyTorch module (full-f32 matmuls)."""
    relu = jax.nn.relu
    hp = jax.lax.Precision.HIGHEST
    mm = lambda a, b: jnp.matmul(a, b, precision=hp)
    p = params
    orig = data[..., :ORIG_DIM]
    lidar = data[..., ORIG_DIM:]
    adj_t = build_adjacency_t(data)

    h = relu(mm(lidar, p["wl1"]) + p["bl1"])
    lid = relu(mm(h, p["wl2"]) + p["bl2"])
    node = jnp.concatenate([orig, lid], axis=-1)

    g1 = node + mm(adj_t, node)
    h1 = relu(mm(relu(mm(g1, p["wg1a"]) + p["bg1a"]), p["wg1b"]) + p["bg1b"])
    g2 = h1 + mm(adj_t, h1)
    h2 = relu(mm(relu(mm(g2, p["wg2a"]) + p["bg2a"]), p["wg2b"]) + p["bg2b"])

    def ln(x, g, b):
        mu = x.mean(-1, keepdims=True)
        var = ((x - mu) ** 2).mean(-1, keepdims=True)
        return (x - mu) / jnp.sqrt(var + LN_EPS) * g + b

    h = h2
    for l in range(p["wv"].shape[0]):
        v = mm(h, p["wv"][l]) + p["bv"][l]
        attn = mm(v, p["wo"][l]) + p["bo"][l]
        h = ln(h + attn, p["ln1g"][l], p["ln1b"][l])
        ff = mm(relu(mm(h, p["wf1"][l]) + p["bf1"][l]), p["wf2"][l]) + p["bf2"][l]
        h = ln(h + ff, p["ln2g"][l], p["ln2b"][l])
    return mm(h, p["wfc"]) + p["bfc"]


if __name__ == "__main__":
    key = jax.random.PRNGKey(0)
    kp, kd, kd2 = jax.random.split(key, 3)
    params = init_params(kp)

    # small demo shape
    B, N = 2, 8
    data = jax.random.normal(kd, (B, N, ORIG_DIM + LIDAR_DIM), jnp.float32)
    out = jax.block_until_ready(gin_policy_forward(data, params))
    assert out.shape == (B, N, OUTPUT_DIM)
    ref = jax.block_until_ready(reference_forward(data, params))
    np.testing.assert_allclose(np.asarray(out), np.asarray(ref), rtol=1e-3, atol=1e-3)

    # explicit small block_batch to exercise the batch-tile padding + multi-step grid
    B2 = 5
    data2 = jax.random.normal(kd2, (B2, N, ORIG_DIM + LIDAR_DIM), jnp.float32)
    out2 = jax.block_until_ready(gin_policy_forward(data2, params, block_batch=2))
    ref2 = jax.block_until_ready(reference_forward(data2, params))
    np.testing.assert_allclose(np.asarray(out2), np.asarray(ref2), rtol=1e-3, atol=1e-3)

    print("KERNEL_OK")
</pallas_src>

<mosaic_0001>
module attributes {stable_mosaic.version = 11 : i64} {
  func.func @kernel(%arg0: i32, %arg1: memref<2x8x26xf32, #tpu.memory_space<vmem>>, %arg2: memref<2x8x8xbf16, #tpu.memory_space<vmem>>, %arg3: memref<384x32xf32, #tpu.memory_space<vmem>>, %arg4: memref<20x32xf32, #tpu.memory_space<vmem>>, %arg5: memref<32x8xf32, #tpu.memory_space<vmem>>, %arg6: memref<1x8xf32, #tpu.memory_space<vmem>>, %arg7: memref<2x8x8xf32, #tpu.memory_space<vmem>>) attributes {dimension_semantics = [#tpu.dimension_semantics<parallel>], iteration_bounds = array<i64: 1>, scalar_prefetch = 0 : i64, scratch_operands = 0 : i64, tpu.core_type = #tpu.core_type<tc>, window_params = [{transform_indices = @transform_0, window_bounds = array<i64: 2, 8, 26>}, {transform_indices = @transform_1, window_bounds = array<i64: 2, 8, 8>}, {pipeline_mode = #tpu.pipeline_mode<synchronous>, transform_indices = @transform_2, window_bounds = array<i64: 384, 32>}, {pipeline_mode = #tpu.pipeline_mode<synchronous>, transform_indices = @transform_3, window_bounds = array<i64: 20, 32>}, {pipeline_mode = #tpu.pipeline_mode<synchronous>, transform_indices = @transform_4, window_bounds = array<i64: 32, 8>}, {pipeline_mode = #tpu.pipeline_mode<synchronous>, transform_indices = @transform_5, window_bounds = array<i64: 1, 8>}, {transform_indices = @transform_6, window_bounds = array<i64: 2, 8, 8>}]} {
    %c0 = arith.constant 0 : index
    %c0_0 = arith.constant 0 : index
    %c0_1 = arith.constant 0 : index
    %0 = vector.load %arg1[%c0, %c0_0, %c0_1] : memref<2x8x26xf32, #tpu.memory_space<vmem>>, vector<2x8x26xf32>
    %1 = vector.extract_strided_slice %0 {offsets = [0, 0, 0], sizes = [2, 8, 6], strides = [1, 1, 1]} : vector<2x8x26xf32> to vector<2x8x6xf32>
    %2 = vector.shape_cast %1 : vector<2x8x6xf32> to vector<16x6xf32>
    %3 = vector.extract_strided_slice %0 {offsets = [0, 0, 6], sizes = [2, 8, 20], strides = [1, 1, 1]} : vector<2x8x26xf32> to vector<2x8x20xf32>
    %4 = vector.shape_cast %3 : vector<2x8x20xf32> to vector<16x20xf32>
    %c0_2 = arith.constant 0 : index
    %c0_3 = arith.constant 0 : index
    %c0_4 = arith.constant 0 : index
    %5 = vector.load %arg2[%c0_2, %c0_3, %c0_4] : memref<2x8x8xbf16, #tpu.memory_space<vmem>>, vector<2x8x8xbf16>
    %c0_5 = arith.constant 0 : index
    %c0_6 = arith.constant 0 : index
    %6 = vector.load %arg3[%c0_5, %c0_6] : memref<384x32xf32, #tpu.memory_space<vmem>>, vector<20x32xf32>
    %cst = arith.constant dense<0.000000e+00> : vector<16x32xf32>
    %7 = tpu.matmul %4, %6, %cst {dimension_numbers = #tpu.dot_dimension_numbers<[1], [0], [0], [1], [0, 0, 1, 1], [], []>} : vector<16x20xf32>, vector<20x32xf32>, vector<16x32xf32> -> vector<16x32xf32>
    %c0_7 = arith.constant 0 : index
    %c0_8 = arith.constant 0 : index
    %8 = vector.load %arg4[%c0_7, %c0_8] : memref<20x32xf32, #tpu.memory_space<vmem>>, vector<1x32xf32>
    %9 = vector.broadcast %8 : vector<1x32xf32> to vector<16x32xf32>
    %10 = arith.addf %7, %9 : vector<16x32xf32>
    %cst_9 = arith.constant 0.000000e+00 : f32
    %11 = vector.broadcast %cst_9 : f32 to vector<16x32xf32>
    %12 = arith.maximumf %10, %11 : vector<16x32xf32>
    %c24 = arith.constant 24 : index
    %c0_10 = arith.constant 0 : index
    %13 = vector.load %arg3[%c24, %c0_10] : memref<384x32xf32, #tpu.memory_space<vmem>>, vector<32x32xf32>
    %cst_11 = arith.constant dense<0.000000e+00> : vector<16x32xf32>
    %14 = tpu.matmul %12, %13, %cst_11 {dimension_numbers = #tpu.dot_dimension_numbers<[1], [0], [0], [1], [0, 0, 1, 1], [], []>} : vector<16x32xf32>, vector<32x32xf32>, vector<16x32xf32> -> vector<16x32xf32>
    %c1 = arith.constant 1 : index
    %c0_12 = arith.constant 0 : index
    %15 = vector.load %arg4[%c1, %c0_12] : memref<20x32xf32, #tpu.memory_space<vmem>>, vector<1x32xf32>
    %16 = vector.broadcast %15 : vector<1x32xf32> to vector<16x32xf32>
    %17 = arith.addf %14, %16 : vector<16x32xf32>
    %cst_13 = arith.constant 0.000000e+00 : f32
    %18 = vector.broadcast %cst_13 : f32 to vector<16x32xf32>
    %19 = arith.maximumf %17, %18 : vector<16x32xf32>
    %20 = tpu.concatenate %2, %19 in 1 : vector<16x6xf32>, vector<16x32xf32> -> vector<16x38xf32>
    %21 = vector.shape_cast %20 : vector<16x38xf32> to vector<2x8x38xf32>
    "tpu.trace_start"() <{level = 10 : i32, message = "bij,bjf->bif"}> : () -> ()
    %cst_14 = arith.constant dense<0.000000e+00> : vector<2x8x38xf32>
    %22 = tpu.matmul %5, %21, %cst_14 {dimension_numbers = #tpu.dot_dimension_numbers<[2], [1], [1], [2], [0, 0, 0, 1, 1, 2], [0], [0]>} : vector<2x8x8xbf16>, vector<2x8x38xf32>, vector<2x8x38xf32> -> vector<2x8x38xf32>
    "tpu.trace_stop"() : () -> ()
    %23 = arith.addf %21, %22 : vector<2x8x38xf32>
    %24 = vector.shape_cast %23 : vector<2x8x38xf32> to vector<16x38xf32>
    %c56 = arith.constant 56 : index
    %c0_15 = arith.constant 0 : index
    %25 = vector.load %arg3[%c56, %c0_15] : memref<384x32xf32, #tpu.memory_space<vmem>>, vector<38x32xf32>
    %cst_16 = arith.constant dense<0.000000e+00> : vector<16x32xf32>
    %26 = tpu.matmul %24, %25, %cst_16 {dimension_numbers = #tpu.dot_dimension_numbers<[1], [0], [0], [1], [0, 0, 1, 1], [], []>} : vector<16x38xf32>, vector<38x32xf32>, vector<16x32xf32> -> vector<16x32xf32>
    %c2 = arith.constant 2 : index
    %c0_17 = arith.constant 0 : index
    %27 = vector.load %arg4[%c2, %c0_17] : memref<20x32xf32, #tpu.memory_space<vmem>>, vector<1x32xf32>
    %28 = vector.broadcast %27 : vector<1x32xf32> to vector<16x32xf32>
    %29 = arith.addf %26, %28 : vector<16x32xf32>
    %cst_18 = arith.constant 0.000000e+00 : f32
    %30 = vector.broadcast %cst_18 : f32 to vector<16x32xf32>
    %31 = arith.maximumf %29, %30 : vector<16x32xf32>
    %c96 = arith.constant 96 : index
    %c0_19 = arith.constant 0 : index
    %32 = vector.load %arg3[%c96, %c0_19] : memref<384x32xf32, #tpu.memory_space<vmem>>, vector<32x32xf32>
    %cst_20 = arith.constant dense<0.000000e+00> : vector<16x32xf32>
    %33 = tpu.matmul %31, %32, %cst_20 {dimension_numbers = #tpu.dot_dimension_numbers<[1], [0], [0], [1], [0, 0, 1, 1], [], []>} : vector<16x32xf32>, vector<32x32xf32>, vector<16x32xf32> -> vector<16x32xf32>
    %c3 = arith.constant 3 : index
    %c0_21 = arith.constant 0 : index
    %34 = vector.load %arg4[%c3, %c0_21] : memref<20x32xf32, #tpu.memory_space<vmem>>, vector<1x32xf32>
    %35 = vector.broadcast %34 : vector<1x32xf32> to vector<16x32xf32>
    %36 = arith.addf %33, %35 : vector<16x32xf32>
    %cst_22 = arith.constant 0.000000e+00 : f32
    %37 = vector.broadcast %cst_22 : f32 to vector<16x32xf32>
    %38 = arith.maximumf %36, %37 : vector<16x32xf32>
    %39 = vector.shape_cast %38 : vector<16x32xf32> to vector<2x8x32xf32>
    "tpu.trace_start"() <{level = 10 : i32, message = "bij,bjf->bif"}> : () -> ()
    %cst_23 = arith.constant dense<0.000000e+00> : vector<2x8x32xf32>
    %40 = tpu.matmul %5, %39, %cst_23 {dimension_numbers = #tpu.dot_dimension_numbers<[2], [1], [1], [2], [0, 0, 0, 1, 1, 2], [0], [0]>} : vector<2x8x8xbf16>, vector<2x8x32xf32>, vector<2x8x32xf32> -> vector<2x8x32xf32>
    "tpu.trace_stop"() : () -> ()
    %41 = arith.addf %39, %40 : vector<2x8x32xf32>
    %42 = vector.shape_cast %41 : vector<2x8x32xf32> to vector<16x32xf32>
    %c128 = arith.constant 128 : index
    %c0_24 = arith.constant 0 : index
    %43 = vector.load %arg3[%c128, %c0_24] : memref<384x32xf32, #tpu.memory_space<vmem>>, vector<32x32xf32>
    %cst_25 = arith.constant dense<0.000000e+00> : vector<16x32xf32>
    %44 = tpu.matmul %42, %43, %cst_25 {dimension_numbers = #tpu.dot_dimension_numbers<[1], [0], [0], [1], [0, 0, 1, 1], [], []>} : vector<16x32xf32>, vector<32x32xf32>, vector<16x32xf32> -> vector<16x32xf32>
    %c4 = arith.constant 4 : index
    %c0_26 = arith.constant 0 : index
    %45 = vector.load %arg4[%c4, %c0_26] : memref<20x32xf32, #tpu.memory_space<vmem>>, vector<1x32xf32>
    %46 = vector.broadcast %45 : vector<1x32xf32> to vector<16x32xf32>
    %47 = arith.addf %44, %46 : vector<16x32xf32>
    %cst_27 = arith.constant 0.000000e+00 : f32
    %48 = vector.broadcast %cst_27 : f32 to vector<16x32xf32>
    %49 = arith.maximumf %47, %48 : vector<16x32xf32>
    %c160 = arith.constant 160 : index
    %c0_28 = arith.constant 0 : index
    %50 = vector.load %arg3[%c160, %c0_28] : memref<384x32xf32, #tpu.memory_space<vmem>>, vector<32x32xf32>
    %cst_29 = arith.constant dense<0.000000e+00> : vector<16x32xf32>
    %51 = tpu.matmul %49, %50, %cst_29 {dimension_numbers = #tpu.dot_dimension_numbers<[1], [0], [0], [1], [0, 0, 1, 1], [], []>} : vector<16x32xf32>, vector<32x32xf32>, vector<16x32xf32> -> vector<16x32xf32>
    %c5 = arith.constant 5 : index
    %c0_30 = arith.constant 0 : index
    %52 = vector.load %arg4[%c5, %c0_30] : memref<20x32xf32, #tpu.memory_space<vmem>>, vector<1x32xf32>
    %53 = vector.broadcast %52 : vector<1x32xf32> to vector<16x32xf32>
    %54 = arith.addf %51, %53 : vector<16x32xf32>
    %cst_31 = arith.constant 0.000000e+00 : f32
    %55 = vector.broadcast %cst_31 : f32 to vector<16x32xf32>
    %56 = arith.maximumf %54, %55 : vector<16x32xf32>
    %c192 = arith.constant 192 : index
    %c0_32 = arith.constant 0 : index
    %57 = vector.load %arg3[%c192, %c0_32] : memref<384x32xf32, #tpu.memory_space<vmem>>, vector<32x32xf32>
    %cst_33 = arith.constant dense<0.000000e+00> : vector<16x32xf32>
    %58 = tpu.matmul %56, %57, %cst_33 {dimension_numbers = #tpu.dot_dimension_numbers<[1], [0], [0], [1], [0, 0, 1, 1], [], []>} : vector<16x32xf32>, vector<32x32xf32>, vector<16x32xf32> -> vector<16x32xf32>
    %c6 = arith.constant 6 : index
    %c0_34 = arith.constant 0 : index
    %59 = vector.load %arg4[%c6, %c0_34] : memref<20x32xf32, #tpu.memory_space<vmem>>, vector<1x32xf32>
    %60 = vector.broadcast %59 : vector<1x32xf32> to vector<16x32xf32>
    %61 = arith.addf %58, %60 : vector<16x32xf32>
    %62 = arith.addf %56, %61 : vector<16x32xf32>
    %cst_35 = arith.constant dense<0.000000e+00> : vector<16xf32>
    %63 = vector.multi_reduction <add>, %62, %cst_35 [1] : vector<16x32xf32> to vector<16xf32>
    %64 = vector.shape_cast %63 : vector<16xf32> to vector<16x1xf32>
    %cst_36 = arith.constant 3.200000e+01 : f32
    %65 = vector.broadcast %cst_36 : f32 to vector<16x1xf32>
    %66 = arith.divf %64, %65 : vector<16x1xf32>
    %67 = arith.mulf %62, %62 : vector<16x32xf32>
    %cst_37 = arith.constant dense<0.000000e+00> : vector<16xf32>
    %68 = vector.multi_reduction <add>, %67, %cst_37 [1] : vector<16x32xf32> to vector<16xf32>
    %69 = vector.shape_cast %68 : vector<16xf32> to vector<16x1xf32>
    %cst_38 = arith.constant 3.200000e+01 : f32
    %70 = vector.broadcast %cst_38 : f32 to vector<16x1xf32>
    %71 = arith.divf %69, %70 : vector<16x1xf32>
    %72 = arith.mulf %66, %66 : vector<16x1xf32>
    %73 = arith.subf %71, %72 : vector<16x1xf32>
    %cst_39 = arith.constant 0.000000e+00 : f32
    %74 = vector.broadcast %cst_39 : f32 to vector<16x1xf32>
    %75 = arith.maximumf %73, %74 : vector<16x1xf32>
    %76 = vector.broadcast %66 : vector<16x1xf32> to vector<16x32xf32>
    %77 = arith.subf %62, %76 : vector<16x32xf32>
    %cst_40 = arith.constant 9.99999974E-6 : f32
    %78 = vector.broadcast %cst_40 : f32 to vector<16x1xf32>
    %79 = arith.addf %75, %78 : vector<16x1xf32>
    %80 = math.rsqrt %79 : vector<16x1xf32>
    %81 = vector.broadcast %80 : vector<16x1xf32> to vector<16x32xf32>
    %82 = arith.mulf %77, %81 : vector<16x32xf32>
    %c7 = arith.constant 7 : index
    %c0_41 = arith.constant 0 : index
    %83 = vector.load %arg4[%c7, %c0_41] : memref<20x32xf32, #tpu.memory_space<vmem>>, vector<1x32xf32>
    %84 = vector.broadcast %83 : vector<1x32xf32> to vector<16x32xf32>
    %85 = arith.mulf %82, %84 : vector<16x32xf32>
    %c8 = arith.constant 8 : index
    %c0_42 = arith.constant 0 : index
    %86 = vector.load %arg4[%c8, %c0_42] : memref<20x32xf32, #tpu.memory_space<vmem>>, vector<1x32xf32>
    %87 = vector.broadcast %86 : vector<1x32xf32> to vector<16x32xf32>
    %88 = arith.addf %85, %87 : vector<16x32xf32>
    %c224 = arith.constant 224 : index
    %c0_43 = arith.constant 0 : index
    %89 = vector.load %arg3[%c224, %c0_43] : memref<384x32xf32, #tpu.memory_space<vmem>>, vector<32x32xf32>
    %cst_44 = arith.constant dense<0.000000e+00> : vector<16x32xf32>
    %90 = tpu.matmul %88, %89, %cst_44 {dimension_numbers = #tpu.dot_dimension_numbers<[1], [0], [0], [1], [0, 0, 1, 1], [], []>} : vector<16x32xf32>, vector<32x32xf32>, vector<16x32xf32> -> vector<16x32xf32>
    %c9 = arith.constant 9 : index
    %c0_45 = arith.constant 0 : index
    %91 = vector.load %arg4[%c9, %c0_45] : memref<20x32xf32, #tpu.memory_space<vmem>>, vector<1x32xf32>
    %92 = vector.broadcast %91 : vector<1x32xf32> to vector<16x32xf32>
    %93 = arith.addf %90, %92 : vector<16x32xf32>
    %cst_46 = arith.constant 0.000000e+00 : f32
    %94 = vector.broadcast %cst_46 : f32 to vector<16x32xf32>
    %95 = arith.maximumf %93, %94 : vector<16x32xf32>
    %c256 = arith.constant 256 : index
    %c0_47 = arith.constant 0 : index
    %96 = vector.load %arg3[%c256, %c0_47] : memref<384x32xf32, #tpu.memory_space<vmem>>, vector<32x32xf32>
    %cst_48 = arith.constant dense<0.000000e+00> : vector<16x32xf32>
    %97 = tpu.matmul %95, %96, %cst_48 {dimension_numbers = #tpu.dot_dimension_numbers<[1], [0], [0], [1], [0, 0, 1, 1], [], []>} : vector<16x32xf32>, vector<32x32xf32>, vector<16x32xf32> -> vector<16x32xf32>
    %c10 = arith.constant 10 : index
    %c0_49 = arith.constant 0 : index
    %98 = vector.load %arg4[%c10, %c0_49] : memref<20x32xf32, #tpu.memory_space<vmem>>, vector<1x32xf32>
    %99 = vector.broadcast %98 : vector<1x32xf32> to vector<16x32xf32>
    %100 = arith.addf %97, %99 : vector<16x32xf32>
    %101 = arith.addf %88, %100 : vector<16x32xf32>
    %cst_50 = arith.constant dense<0.000000e+00> : vector<16xf32>
    %102 = vector.multi_reduction <add>, %101, %cst_50 [1] : vector<16x32xf32> to vector<16xf32>
    %103 = vector.shape_cast %102 : vector<16xf32> to vector<16x1xf32>
    %cst_51 = arith.constant 3.200000e+01 : f32
    %104 = vector.broadcast %cst_51 : f32 to vector<16x1xf32>
    %105 = arith.divf %103, %104 : vector<16x1xf32>
    %106 = arith.mulf %101, %101 : vector<16x32xf32>
    %cst_52 = arith.constant dense<0.000000e+00> : vector<16xf32>
    %107 = vector.multi_reduction <add>, %106, %cst_52 [1] : vector<16x32xf32> to vector<16xf32>
    %108 = vector.shape_cast %107 : vector<16xf32> to vector<16x1xf32>
    %cst_53 = arith.constant 3.200000e+01 : f32
    %109 = vector.broadcast %cst_53 : f32 to vector<16x1xf32>
    %110 = arith.divf %108, %109 : vector<16x1xf32>
    %111 = arith.mulf %105, %105 : vector<16x1xf32>
    %112 = arith.subf %110, %111 : vector<16x1xf32>
    %cst_54 = arith.constant 0.000000e+00 : f32
    %113 = vector.broadcast %cst_54 : f32 to vector<16x1xf32>
    %114 = arith.maximumf %112, %113 : vector<16x1xf32>
    %115 = vector.broadcast %105 : vector<16x1xf32> to vector<16x32xf32>
    %116 = arith.subf %101, %115 : vector<16x32xf32>
    %cst_55 = arith.constant 9.99999974E-6 : f32
    %117 = vector.broadcast %cst_55 : f32 to vector<16x1xf32>
    %118 = arith.addf %114, %117 : vector<16x1xf32>
    %119 = math.rsqrt %118 : vector<16x1xf32>
    %120 = vector.broadcast %119 : vector<16x1xf32> to vector<16x32xf32>
    %121 = arith.mulf %116, %120 : vector<16x32xf32>
    %c11 = arith.constant 11 : index
    %c0_56 = arith.constant 0 : index
    %122 = vector.load %arg4[%c11, %c0_56] : memref<20x32xf32, #tpu.memory_space<vmem>>, vector<1x32xf32>
    %123 = vector.broadcast %122 : vector<1x32xf32> to vector<16x32xf32>
    %124 = arith.mulf %121, %123 : vector<16x32xf32>
    %c12 = arith.constant 12 : index
    %c0_57 = arith.constant 0 : index
    %125 = vector.load %arg4[%c12, %c0_57] : memref<20x32xf32, #tpu.memory_space<vmem>>, vector<1x32xf32>
    %126 = vector.broadcast %125 : vector<1x32xf32> to vector<16x32xf32>
    %127 = arith.addf %124, %126 : vector<16x32xf32>
    %c288 = arith.constant 288 : index
    %c0_58 = arith.constant 0 : index
    %128 = vector.load %arg3[%c288, %c0_58] : memref<384x32xf32, #tpu.memory_space<vmem>>, vector<32x32xf32>
    %cst_59 = arith.constant dense<0.000000e+00> : vector<16x32xf32>
    %129 = tpu.matmul %127, %128, %cst_59 {dimension_numbers = #tpu.dot_dimension_numbers<[1], [0], [0], [1], [0, 0, 1, 1], [], []>} : vector<16x32xf32>, vector<32x32xf32>, vector<16x32xf32> -> vector<16x32xf32>
    %c13 = arith.constant 13 : index
    %c0_60 = arith.constant 0 : index
    %130 = vector.load %arg4[%c13, %c0_60] : memref<20x32xf32, #tpu.memory_space<vmem>>, vector<1x32xf32>
    %131 = vector.broadcast %130 : vector<1x32xf32> to vector<16x32xf32>
    %132 = arith.addf %129, %131 : vector<16x32xf32>
    %133 = arith.addf %127, %132 : vector<16x32xf32>
    %cst_61 = arith.constant dense<0.000000e+00> : vector<16xf32>
    %134 = vector.multi_reduction <add>, %133, %cst_61 [1] : vector<16x32xf32> to vector<16xf32>
    %135 = vector.shape_cast %134 : vector<16xf32> to vector<16x1xf32>
    %cst_62 = arith.constant 3.200000e+01 : f32
    %136 = vector.broadcast %cst_62 : f32 to vector<16x1xf32>
    %137 = arith.divf %135, %136 : vector<16x1xf32>
    %138 = arith.mulf %133, %133 : vector<16x32xf32>
    %cst_63 = arith.constant dense<0.000000e+00> : vector<16xf32>
    %139 = vector.multi_reduction <add>, %138, %cst_63 [1] : vector<16x32xf32> to vector<16xf32>
    %140 = vector.shape_cast %139 : vector<16xf32> to vector<16x1xf32>
    %cst_64 = arith.constant 3.200000e+01 : f32
    %141 = vector.broadcast %cst_64 : f32 to vector<16x1xf32>
    %142 = arith.divf %140, %141 : vector<16x1xf32>
    %143 = arith.mulf %137, %137 : vector<16x1xf32>
    %144 = arith.subf %142, %143 : vector<16x1xf32>
    %cst_65 = arith.constant 0.000000e+00 : f32
    %145 = vector.broadcast %cst_65 : f32 to vector<16x1xf32>
    %146 = arith.maximumf %144, %145 : vector<16x1xf32>
    %147 = vector.broadcast %137 : vector<16x1xf32> to vector<16x32xf32>
    %148 = arith.subf %133, %147 : vector<16x32xf32>
    %cst_66 = arith.constant 9.99999974E-6 : f32
    %149 = vector.broadcast %cst_66 : f32 to vector<16x1xf32>
    %150 = arith.addf %146, %149 : vector<16x1xf32>
    %151 = math.rsqrt %150 : vector<16x1xf32>
    %152 = vector.broadcast %151 : vector<16x1xf32> to vector<16x32xf32>
    %153 = arith.mulf %148, %152 : vector<16x32xf32>
    %c14 = arith.constant 14 : index
    %c0_67 = arith.constant 0 : index
    %154 = vector.load %arg4[%c14, %c0_67] : memref<20x32xf32, #tpu.memory_space<vmem>>, vector<1x32xf32>
    %155 = vector.broadcast %154 : vector<1x32xf32> to vector<16x32xf32>
    %156 = arith.mulf %153, %155 : vector<16x32xf32>
    %c15 = arith.constant 15 : index
    %c0_68 = arith.constant 0 : index
    %157 = vector.load %arg4[%c15, %c0_68] : memref<20x32xf32, #tpu.memory_space<vmem>>, vector<1x32xf32>
    %158 = vector.broadcast %157 : vector<1x32xf32> to vector<16x32xf32>
    %159 = arith.addf %156, %158 : vector<16x32xf32>
    %c320 = arith.constant 320 : index
    %c0_69 = arith.constant 0 : index
    %160 = vector.load %arg3[%c320, %c0_69] : memref<384x32xf32, #tpu.memory_space<vmem>>, vector<32x32xf32>
    %cst_70 = arith.constant dense<0.000000e+00> : vector<16x32xf32>
    %161 = tpu.matmul %159, %160, %cst_70 {dimension_numbers = #tpu.dot_dimension_numbers<[1], [0], [0], [1], [0, 0, 1, 1], [], []>} : vector<16x32xf32>, vector<32x32xf32>, vector<16x32xf32> -> vector<16x32xf32>
    %c16 = arith.constant 16 : index
    %c0_71 = arith.constant 0 : index
    %162 = vector.load %arg4[%c16, %c0_71] : memref<20x32xf32, #tpu.memory_space<vmem>>, vector<1x32xf32>
    %163 = vector.broadcast %162 : vector<1x32xf32> to vector<16x32xf32>
    %164 = arith.addf %161, %163 : vector<16x32xf32>
    %cst_72 = arith.constant 0.000000e+00 : f32
    %165 = vector.broadcast %cst_72 : f32 to vector<16x32xf32>
    %166 = arith.maximumf %164, %165 : vector<16x32xf32>
    %c352 = arith.constant 352 : index
    %c0_73 = arith.constant 0 : index
    %167 = vector.load %arg3[%c352, %c0_73] : memref<384x32xf32, #tpu.memory_space<vmem>>, vector<32x32xf32>
    %cst_74 = arith.constant dense<0.000000e+00> : vector<16x32xf32>
    %168 = tpu.matmul %166, %167, %cst_74 {dimension_numbers = #tpu.dot_dimension_numbers<[1], [0], [0], [1], [0, 0, 1, 1], [], []>} : vector<16x32xf32>, vector<32x32xf32>, vector<16x32xf32> -> vector<16x32xf32>
    %c17 = arith.constant 17 : index
    %c0_75 = arith.constant 0 : index
    %169 = vector.load %arg4[%c17, %c0_75] : memref<20x32xf32, #tpu.memory_space<vmem>>, vector<1x32xf32>
    %170 = vector.broadcast %169 : vector<1x32xf32> to vector<16x32xf32>
    %171 = arith.addf %168, %170 : vector<16x32xf32>
    %172 = arith.addf %159, %171 : vector<16x32xf32>
    %cst_76 = arith.constant dense<0.000000e+00> : vector<16xf32>
    %173 = vector.multi_reduction <add>, %172, %cst_76 [1] : vector<16x32xf32> to vector<16xf32>
    %174 = vector.shape_cast %173 : vector<16xf32> to vector<16x1xf32>
    %cst_77 = arith.constant 3.200000e+01 : f32
    %175 = vector.broadcast %cst_77 : f32 to vector<16x1xf32>
    %176 = arith.divf %174, %175 : vector<16x1xf32>
    %177 = arith.mulf %172, %172 : vector<16x32xf32>
    %cst_78 = arith.constant dense<0.000000e+00> : vector<16xf32>
    %178 = vector.multi_reduction <add>, %177, %cst_78 [1] : vector<16x32xf32> to vector<16xf32>
    %179 = vector.shape_cast %178 : vector<16xf32> to vector<16x1xf32>
    %cst_79 = arith.constant 3.200000e+01 : f32
    %180 = vector.broadcast %cst_79 : f32 to vector<16x1xf32>
    %181 = arith.divf %179, %180 : vector<16x1xf32>
    %182 = arith.mulf %176, %176 : vector<16x1xf32>
    %183 = arith.subf %181, %182 : vector<16x1xf32>
    %cst_80 = arith.constant 0.000000e+00 : f32
    %184 = vector.broadcast %cst_80 : f32 to vector<16x1xf32>
    %185 = arith.maximumf %183, %184 : vector<16x1xf32>
    %186 = vector.broadcast %176 : vector<16x1xf32> to vector<16x32xf32>
    %187 = arith.subf %172, %186 : vector<16x32xf32>
    %cst_81 = arith.constant 9.99999974E-6 : f32
    %188 = vector.broadcast %cst_81 : f32 to vector<16x1xf32>
    %189 = arith.addf %185, %188 : vector<16x1xf32>
    %190 = math.rsqrt %189 : vector<16x1xf32>
    %191 = vector.broadcast %190 : vector<16x1xf32> to vector<16x32xf32>
    %192 = arith.mulf %187, %191 : vector<16x32xf32>
    %c18 = arith.constant 18 : index
    %c0_82 = arith.constant 0 : index
    %193 = vector.load %arg4[%c18, %c0_82] : memref<20x32xf32, #tpu.memory_space<vmem>>, vector<1x32xf32>
    %194 = vector.broadcast %193 : vector<1x32xf32> to vector<16x32xf32>
    %195 = arith.mulf %192, %194 : vector<16x32xf32>
    %c19 = arith.constant 19 : index
    %c0_83 = arith.constant 0 : index
    %196 = vector.load %arg4[%c19, %c0_83] : memref<20x32xf32, #tpu.memory_space<vmem>>, vector<1x32xf32>
    %197 = vector.broadcast %196 : vector<1x32xf32> to vector<16x32xf32>
    %198 = arith.addf %195, %197 : vector<16x32xf32>
    %c0_84 = arith.constant 0 : index
    %c0_85 = arith.constant 0 : index
    %199 = vector.load %arg5[%c0_84, %c0_85] : memref<32x8xf32, #tpu.memory_space<vmem>>, vector<32x8xf32>
    %cst_86 = arith.constant dense<0.000000e+00> : vector<16x8xf32>
    %200 = tpu.matmul %198, %199, %cst_86 {dimension_numbers = #tpu.dot_dimension_numbers<[1], [0], [0], [1], [0, 0, 1, 1], [], []>} : vector<16x32xf32>, vector<32x8xf32>, vector<16x8xf32> -> vector<16x8xf32>
    %c0_87 = arith.constant 0 : index
    %c0_88 = arith.constant 0 : index
    %201 = vector.load %arg6[%c0_87, %c0_88] : memref<1x8xf32, #tpu.memory_space<vmem>>, vector<1x8xf32>
    %202 = vector.broadcast %201 : vector<1x8xf32> to vector<16x8xf32>
    %203 = arith.addf %200, %202 : vector<16x8xf32>
    %204 = vector.shape_cast %203 : vector<16x8xf32> to vector<2x8x8xf32>
    %c0_89 = arith.constant 0 : index
    %c0_90 = arith.constant 0 : index
    %c0_91 = arith.constant 0 : index
    %205 = vector.load %arg7[%c0_89, %c0_90, %c0_91] : memref<2x8x8xf32, #tpu.memory_space<vmem>>, vector<2x8x8xf32>
    tpu.vector_store %arg7[%c0_89, %c0_90, %c0_91], %204 {strides = array<i32>} : memref<2x8x8xf32, #tpu.memory_space<vmem>>, vector<2x8x8xf32>,
    return
  }
  func.func @transform_0(%arg0: i32) -> (i32, i32, i32) {
    %c0_i32 = arith.constant 0 : i32
    %c0_i32_0 = arith.constant 0 : i32
    %c0_i32_1 = arith.constant 0 : i32
    return %arg0, %c0_i32, %c0_i32_0 : i32, i32, i32
  }
  func.func @transform_1(%arg0: i32) -> (i32, i32, i32) {
    %c0_i32 = arith.constant 0 : i32
    %c0_i32_0 = arith.constant 0 : i32
    %c0_i32_1 = arith.constant 0 : i32
    return %arg0, %c0_i32, %c0_i32_0 : i32, i32, i32
  }
  func.func @transform_2(%arg0: i32) -> (i32, i32) {
    %c0_i32 = arith.constant 0 : i32
    %c0_i32_0 = arith.constant 0 : i32
    %c0_i32_1 = arith.constant 0 : i32
    return %c0_i32, %c0_i32_0 : i32, i32
  }
  func.func @transform_3(%arg0: i32) -> (i32, i32) {
    %c0_i32 = arith.constant 0 : i32
    %c0_i32_0 = arith.constant 0 : i32
    %c0_i32_1 = arith.constant 0 : i32
    return %c0_i32, %c0_i32_0 : i32, i32
  }
  func.func @transform_4(%arg0: i32) -> (i32, i32) {
    %c0_i32 = arith.constant 0 : i32
    %c0_i32_0 = arith.constant 0 : i32
    %c0_i32_1 = arith.constant 0 : i32
    return %c0_i32, %c0_i32_0 : i32, i32
  }
  func.func @transform_5(%arg0: i32) -> (i32, i32) {
    %c0_i32 = arith.constant 0 : i32
    %c0_i32_0 = arith.constant 0 : i32
    %c0_i32_1 = arith.constant 0 : i32
    return %c0_i32, %c0_i32_0 : i32, i32
  }
  func.func @transform_6(%arg0: i32) -> (i32, i32, i32) {
    %c0_i32 = arith.constant 0 : i32
    %c0_i32_0 = arith.constant 0 : i32
    %c0_i32_1 = arith.constant 0 : i32
    return %arg0, %c0_i32, %c0_i32_0 : i32, i32, i32
  }
}

</mosaic_0001>

<llo_original>
// kernel: tpu_custom_call.1
$region0: #{tpu_custom_call.1}
  #allocation0 [shape = 'u32[]', space=smem, size = 0x4, offset = 0x4, fixed_abs, tag = 'smem constant byte address 0x4 - core index']
  #allocation1 [shape = 'u32[72,128]{1,0:T(1,128)}', space=vmem, size = 0x9000, scoped, tag = 'internal scratch']
  %s0 = inlined_call_operand.vmem [shape: f32[2,8,26], index: 0, kind: input, shape index: {}]
  %s1 = inlined_call_operand.vmem [shape: bf16[2,8,8], index: 1, kind: input, shape index: {}]
  %s2 = inlined_call_operand.vmem [shape: f32[384,32], index: 2, kind: input, shape index: {}]
  %s3 = inlined_call_operand.vmem [shape: f32[20,32], index: 3, kind: input, shape index: {}]
  %s4 = inlined_call_operand.vmem [shape: f32[32,8], index: 4, kind: input, shape index: {}]
  %s5 = inlined_call_operand.vmem [shape: f32[1,8], index: 5, kind: input, shape index: {}]
  %s6 = inlined_call_operand.hbm [shape: f32[2,8,8], index: 6, kind: output, shape index: {}]
  %s7 = sld [smem:[#allocation0]]
  $region34: #{tpu_custom_call.1} parent=0
    _
  %s9 = ssub.s32 1, %s7
  %s10 = scalar_select 0, %s9, %s7
  $region1: #{tpu_custom_call.1} parent=0
    #allocation2 [shape = 'u8[8192]{0}', space=vmem, size = 0x2000, scoped, tag = 'output window, operand 0, single buffered']
    #allocation3 [shape = 's32[1]{0}', space=sflag, size = 0x4, scoped, tag = 'scoped memory for tpu_custom_call.1']
    %11 = vsyncpa [#allocation3], 0
    // Predicated region
    $region2: #{tpu_custom_call.1} parent=1 // pred_check
      _
    $region3: #{tpu_custom_call.1} parent=1 // pred_check_branch
      %13 = sbr.rel (0) target = $region5
    $region4: #{tpu_custom_call.1} parent=1 // pred_region
      _
    $region5: #{tpu_custom_call.1} parent=1 // pred_fallthru
      _
    // Predicated region
    $region6: #{tpu_custom_call.1} parent=1 // pred_check
      _
    $region7: #{tpu_custom_call.1} parent=1 // pred_check_branch
      %15 = sbr.rel (0) target = $region9
    $region8: #{tpu_custom_call.1} parent=1 // pred_region
      _
    $region9: #{tpu_custom_call.1} parent=1 // pred_fallthru
      _
    // Predicated region
    $region10: #{tpu_custom_call.1} parent=1 // pred_check
      _
    $region11: #{tpu_custom_call.1} parent=1 // pred_check_branch
      %17 = sbr.rel (0) target = $region13
    $region12: #{tpu_custom_call.1} parent=1 // pred_region
      _
    $region13: #{tpu_custom_call.1} parent=1 // pred_fallthru
      _
    // Predicated region
    $region14: #{tpu_custom_call.1} parent=1 // pred_check
      _
    $region15: #{tpu_custom_call.1} parent=1 // pred_check_branch
      %19 = sbr.rel (0) target = $region17
    $region16: #{tpu_custom_call.1} parent=1 // pred_region
      _
    $region17: #{tpu_custom_call.1} parent=1 // pred_fallthru
      _
    // Predicated region
    $region18: #{tpu_custom_call.1} parent=1 // pred_check
      _
    $region19: #{tpu_custom_call.1} parent=1 // pred_check_branch
      %21 = sbr.rel (0) target = $region21
    $region20: #{tpu_custom_call.1} parent=1 // pred_region
      _
    $region21: #{tpu_custom_call.1} parent=1 // pred_fallthru
      _
    // Predicated region
    $region22: #{tpu_custom_call.1} parent=1 // pred_check
      _
    $region23: #{tpu_custom_call.1} parent=1 // pred_check_branch
      %23 = sbr.rel (0) target = $region25
    $region24: #{tpu_custom_call.1} parent=1 // pred_region
      _
    $region25: #{tpu_custom_call.1} parent=1 // pred_fallthru
      _
    %v24 = vld [vmem:[%s0] sm:$0xff]
    %v25 = vld [vmem:[%s0 + $0x8] sm:$0xff]
    %v26 = vld [vmem:[%s1] sm:$0xf]
    %v27 = vld [vmem:[%s1 + $0x4] sm:$0xf]
    %v28 = vld [vmem:[%s2] sm:$0xff]
    %v29 = vld [vmem:[%s2 + $0x8] sm:$0xff]
    %v30 = vld [vmem:[%s2 + $0x10] sm:$0xf]
    %v31 = vld [vmem:[%s3] sm:$0x1]
    %v32 = vperm.slane %v31, 0
    %35 = vrot.lane.b32.xlu0 %v24, 122
    %v36 = vpop.permute.xlu0 %35
    %37 = vrot.lane.b32.xlu0 %v25, 122
    %v38 = vpop.permute.xlu0 %37
    %vm39 = vcmask 162816
    %v40 = vsel %vm39, %v36, 0
    %v42 = vsel %vm39, %v38, 0
    %vm44 = vcmask 1043456
    %v46 = vsel %vm44, %v30, 0
    %48 = vmatpush.msra.mxu0 0.0
    %49 = vmatpush.msra.mxu0 0.0
    %50 = vmatpush.msra.mxu0 0.0
    %51 = vmatpush.msra.mxu0 0.0
    %52 = vmatpush.msra.mxu0 0.0
    %53 = vmatpush.msra.mxu0 0.0
    %54 = vmatpush.msra.mxu0 0.0
    %55 = vmatpush.msra.mxu0 0.0
    %56 = vmatpush.msra.mxu0 0.0
    %57 = vmatpush.msra.mxu0 0.0
    %58 = vmatpush.msra.mxu0 0.0
    %59 = vmatpush.msra.mxu0 0.0
    %60 = vmatpush.msra.mxu0 0.0
    %61 = vmatpush.msra.mxu0 %v46
    %62 = vmatpush.msra.mxu0 %v29
    %63 = vmatpush.msra.mxu0 %v28
    %64 = vmatmul.f32.gmra.mxu0 %v40
    %v65 = vpop.f32.mrf.mxu0
    %v66 = vadd.f32 %v32, %v65
    %67 = vmatmul.f32.gmra.mxu0 %v42
    %v68 = vpop.f32.mrf.mxu0
    %v69 = vadd.f32 %v32, %v68
    %70 = vdwg.mxu0
    %v71 = vmax.f32 %v66, 0.0
    %v72 = vmax.f32 %v69, 0.0
    %v73 = vld [vmem:[%s2 + $0x18] sm:$0xff]
    %v74 = vld [vmem:[%s2 + $0x20] sm:$0xff]
    %v75 = vld [vmem:[%s2 + $0x28] sm:$0xff]
    %v76 = vld [vmem:[%s2 + $0x30] sm:$0xff]
    %v77 = vld [vmem:[%s3 + $0x1] sm:$0x1]
    %v78 = vperm.slane %v77, 0
    %vm79 = vcmask 261120
    %v81 = vsel %vm79, %v71, 0
    %v84 = vsel %vm79, %v72, 0
    %86 = vmatpush.msra.mxu0 0.0
    %87 = vmatpush.msra.mxu0 0.0
    %88 = vmatpush.msra.mxu0 0.0
    %89 = vmatpush.msra.mxu0 0.0
    %90 = vmatpush.msra.mxu0 0.0
    %91 = vmatpush.msra.mxu0 0.0
    %92 = vmatpush.msra.mxu0 0.0
    %93 = vmatpush.msra.mxu0 0.0
    %94 = vmatpush.msra.mxu0 0.0
    %95 = vmatpush.msra.mxu0 0.0
    %96 = vmatpush.msra.mxu0 0.0
    %97 = vmatpush.msra.mxu0 0.0
    %98 = vmatpush.msra.mxu0 %v76
    %99 = vmatpush.msra.mxu0 %v75
    %100 = vmatpush.msra.mxu0 %v74
    %101 = vmatpush.msra.mxu0 %v73
    %102 = vmatmul.f32.gmra.mxu0 %v81
    %v103 = vpop.f32.mrf.mxu0
    %v104 = vadd.f32 %v78, %v103
    %105 = vmatmul.f32.gmra.mxu0 %v84
    %v106 = vpop.f32.mrf.mxu0
    %v107 = vadd.f32 %v78, %v106
    %108 = vdwg.mxu0
    %v109 = vmax.f32 %v104, 0.0
    %v110 = vmax.f32 %v107, 0.0
    %113 = vrot.lane.b32.xlu0 %v109, 6
    %v114 = vpop.permute.xlu0 %113
    %115 = vrot.lane.b32.xlu0 %v110, 6
    %v116 = vpop.permute.xlu0 %115
    %vm119 = vcmask 48128
    %v120 = vsel %vm119, %v24, %v114
    %v121 = vsel %vm119, %v25, %v116
    %vm122 = vcmask 64512
    %v124 = vsel %vm122, %v26, 0
    %126 = vmatpush.msra.mxu0 0.0
    %127 = vmatpush.msra.mxu0 0.0
    %128 = vmatpush.msra.mxu0 0.0
    %129 = vmatpush.msra.mxu0 0.0
    %130 = vmatpush.msra.mxu0 0.0
    %131 = vmatpush.msra.mxu0 0.0
    %132 = vmatpush.msra.mxu0 0.0
    %133 = vmatpush.msra.mxu0 0.0
    %134 = vmatpush.msra.mxu0 0.0
    %135 = vmatpush.msra.mxu0 0.0
    %136 = vmatpush.msra.mxu0 0.0
    %137 = vmatpush.msra.mxu0 0.0
    %138 = vmatpush.msra.mxu0 0.0
    %139 = vmatpush.msra.mxu0 0.0
    %140 = vmatpush.msra.mxu0 0.0
    %141 = vmatpush.msra.mxu0 %v120
    %142 = vmatmul.bf16.gmra.mxu0 %v124
    %v143 = vpop.f32.mrf.mxu0
    %v144 = vadd.f32 0.0, %v143
    %v145 = vpop.f32.mrf.mxu0
    %146 = vdwg.mxu0
    %v148 = vsel %vm122, %v27, 0
    %150 = vmatpush.msra.mxu0 0.0
    %151 = vmatpush.msra.mxu0 0.0
    %152 = vmatpush.msra.mxu0 0.0
    %153 = vmatpush.msra.mxu0 0.0
    %154 = vmatpush.msra.mxu0 0.0
    %155 = vmatpush.msra.mxu0 0.0
    %156 = vmatpush.msra.mxu0 0.0
    %157 = vmatpush.msra.mxu0 0.0
    %158 = vmatpush.msra.mxu0 0.0
    %159 = vmatpush.msra.mxu0 0.0
    %160 = vmatpush.msra.mxu0 0.0
    %161 = vmatpush.msra.mxu0 0.0
    %162 = vmatpush.msra.mxu0 0.0
    %163 = vmatpush.msra.mxu0 0.0
    %164 = vmatpush.msra.mxu0 0.0
    %165 = vmatpush.msra.mxu0 %v121
    %166 = vmatmul.bf16.gmra.mxu0 %v148
    %v167 = vpop.f32.mrf.mxu0
    %v168 = vadd.f32 0.0, %v167
    %v169 = vpop.f32.mrf.mxu0
    %170 = vdwg.mxu0
    %v171 = vadd.f32 %v120, %v144
    %v172 = vadd.f32 %v121, %v168
    %v173 = vld [vmem:[%s2 + $0x38] sm:$0xff]
    %v174 = vld [vmem:[%s2 + $0x40] sm:$0xff]
    %v175 = vld [vmem:[%s2 + $0x48] sm:$0xff]
    %v176 = vld [vmem:[%s2 + $0x50] sm:$0xff]
    %v177 = vld [vmem:[%s2 + $0x58] sm:$0x3f]
    %v178 = vld [vmem:[%s3 + $0x2] sm:$0x1]
    %v179 = vperm.slane %v178, 0
    %vm180 = vcmask 310272
    %v182 = vsel %vm180, %v171, 0
    %v185 = vsel %vm180, %v172, 0
    %vm187 = vcmask 1045504
    %v189 = vsel %vm187, %v177, 0
    %191 = vmatpush.msra.mxu0 0.0
    %192 = vmatpush.msra.mxu0 0.0
    %193 = vmatpush.msra.mxu0 0.0
    %194 = vmatpush.msra.mxu0 0.0
    %195 = vmatpush.msra.mxu0 0.0
    %196 = vmatpush.msra.mxu0 0.0
    %197 = vmatpush.msra.mxu0 0.0
    %198 = vmatpush.msra.mxu0 0.0
    %199 = vmatpush.msra.mxu0 0.0
    %200 = vmatpush.msra.mxu0 0.0
    %201 = vmatpush.msra.mxu0 0.0
    %202 = vmatpush.msra.mxu0 %v189
    %203 = vmatpush.msra.mxu0 %v176
    %204 = vmatpush.msra.mxu0 %v175
    %205 = vmatpush.msra.mxu0 %v174
    %206 = vmatpush.msra.mxu0 %v173
    %207 = vmatmul.f32.gmra.mxu0 %v182
    %v208 = vpop.f32.mrf.mxu0
    %v209 = vadd.f32 %v179, %v208
    %210 = vmatmul.f32.gmra.mxu0 %v185
    %v211 = vpop.f32.mrf.mxu0
    %v212 = vadd.f32 %v179, %v211
    %213 = vdwg.mxu0
    %v214 = vmax.f32 %v209, 0.0
    %v215 = vmax.f32 %v212, 0.0
    %v216 = vld [vmem:[%s2 + $0x60] sm:$0xff]
    %v217 = vld [vmem:[%s2 + $0x68] sm:$0xff]
    %v218 = vld [vmem:[%s2 + $0x70] sm:$0xff]
    %v219 = vld [vmem:[%s2 + $0x78] sm:$0xff]
    %v220 = vld [vmem:[%s3 + $0x3] sm:$0x1]
    %v221 = vperm.slane %v220, 0
    %v223 = vsel %vm79, %v214, 0
    %v226 = vsel %vm79, %v215, 0
    %228 = vmatpush.msra.mxu0 0.0
    %229 = vmatpush.msra.mxu0 0.0
    %230 = vmatpush.msra.mxu0 0.0
    %231 = vmatpush.msra.mxu0 0.0
    %232 = vmatpush.msra.mxu0 0.0
    %233 = vmatpush.msra.mxu0 0.0
    %234 = vmatpush.msra.mxu0 0.0
    %235 = vmatpush.msra.mxu0 0.0
    %236 = vmatpush.msra.mxu0 0.0
    %237 = vmatpush.msra.mxu0 0.0
    %238 = vmatpush.msra.mxu0 0.0
    %239 = vmatpush.msra.mxu0 0.0
    %240 = vmatpush.msra.mxu0 %v219
    %241 = vmatpush.msra.mxu0 %v218
    %242 = vmatpush.msra.mxu0 %v217
    %243 = vmatpush.msra.mxu0 %v216
    %244 = vmatmul.f32.gmra.mxu0 %v223
    %v245 = vpop.f32.mrf.mxu0
    %v246 = vadd.f32 %v221, %v245
    %247 = vmatmul.f32.gmra.mxu0 %v226
    %v248 = vpop.f32.mrf.mxu0
    %v249 = vadd.f32 %v221, %v248
    %250 = vdwg.mxu0
    %v251 = vmax.f32 %v246, 0.0
    %v252 = vmax.f32 %v249, 0.0
    %253 = vmatpush.msra.mxu0 0.0
    %254 = vmatpush.msra.mxu0 0.0
    %255 = vmatpush.msra.mxu0 0.0
    %256 = vmatpush.msra.mxu0 0.0
    %257 = vmatpush.msra.mxu0 0.0
    %258 = vmatpush.msra.mxu0 0.0
    %259 = vmatpush.msra.mxu0 0.0
    %260 = vmatpush.msra.mxu0 0.0
    %261 = vmatpush.msra.mxu0 0.0
    %262 = vmatpush.msra.mxu0 0.0
    %263 = vmatpush.msra.mxu0 0.0
    %264 = vmatpush.msra.mxu0 0.0
    %265 = vmatpush.msra.mxu0 0.0
    %266 = vmatpush.msra.mxu0 0.0
    %267 = vmatpush.msra.mxu0 0.0
    %268 = vmatpush.msra.mxu0 %v251
    %269 = vmatmul.bf16.gmra.mxu0 %v124
    %v270 = vpop.f32.mrf.mxu0
    %v271 = vadd.f32 0.0, %v270
    %v272 = vpop.f32.mrf.mxu0
    %273 = vdwg.mxu0
    %274 = vmatpush.msra.mxu0 0.0
    %275 = vmatpush.msra.mxu0 0.0
    %276 = vmatpush.msra.mxu0 0.0
    %277 = vmatpush.msra.mxu0 0.0
    %278 = vmatpush.msra.mxu0 0.0
    %279 = vmatpush.msra.mxu0 0.0
    %280 = vmatpush.msra.mxu0 0.0
    %281 = vmatpush.msra.mxu0 0.0
    %282 = vmatpush.msra.mxu0 0.0
    %283 = vmatpush.msra.mxu0 0.0
    %284 = vmatpush.msra.mxu0 0.0
    %285 = vmatpush.msra.mxu0 0.0
    %286 = vmatpush.msra.mxu0 0.0
    %287 = vmatpush.msra.mxu0 0.0
    %288 = vmatpush.msra.mxu0 0.0
    %289 = vmatpush.msra.mxu0 %v252
    %290 = vmatmul.bf16.gmra.mxu0 %v148
    %v291 = vpop.f32.mrf.mxu0
    %v292 = vadd.f32 0.0, %v291
    %v293 = vpop.f32.mrf.mxu0
    %294 = vdwg.mxu0
    %v295 = vadd.f32 %v251, %v271
    %v296 = vadd.f32 %v252, %v292
    %v297 = vld [vmem:[%s2 + $0x80] sm:$0xff]
    %v298 = vld [vmem:[%s2 + $0x88] sm:$0xff]
    %v299 = vld [vmem:[%s2 + $0x90] sm:$0xff]
    %v300 = vld [vmem:[%s2 + $0x98] sm:$0xff]
    %v301 = vld [vmem:[%s3 + $0x4] sm:$0x1]
    %v302 = vperm.slane %v301, 0
    %v304 = vsel %vm79, %v295, 0
    %v307 = vsel %vm79, %v296, 0
    %309 = vmatpush.msra.mxu0 0.0
    %310 = vmatpush.msra.mxu0 0.0
    %311 = vmatpush.msra.mxu0 0.0
    %312 = vmatpush.msra.mxu0 0.0
    %313 = vmatpush.msra.mxu0 0.0
    %314 = vmatpush.msra.mxu0 0.0
    %315 = vmatpush.msra.mxu0 0.0
    %316 = vmatpush.msra.mxu0 0.0
    %317 = vmatpush.msra.mxu0 0.0
    %318 = vmatpush.msra.mxu0 0.0
    %319 = vmatpush.msra.mxu0 0.0
    %320 = vmatpush.msra.mxu0 0.0
    %321 = vmatpush.msra.mxu0 %v300
    %322 = vmatpush.msra.mxu0 %v299
    %323 = vmatpush.msra.mxu0 %v298
    %324 = vmatpush.msra.mxu0 %v297
    %325 = vmatmul.f32.gmra.mxu0 %v304
    %v326 = vpop.f32.mrf.mxu0
    %v327 = vadd.f32 %v302, %v326
    %328 = vmatmul.f32.gmra.mxu0 %v307
    %v329 = vpop.f32.mrf.mxu0
    %v330 = vadd.f32 %v302, %v329
    %331 = vdwg.mxu0
    %v332 = vmax.f32 %v327, 0.0
    %v333 = vmax.f32 %v330, 0.0
    %v334 = vld [vmem:[%s2 + $0xa0] sm:$0xff]
    %v335 = vld [vmem:[%s2 + $0xa8] sm:$0xff]
    %v336 = vld [vmem:[%s2 + $0xb0] sm:$0xff]
    %v337 = vld [vmem:[%s2 + $0xb8] sm:$0xff]
    %v338 = vld [vmem:[%s3 + $0x5] sm:$0x1]
    %v339 = vperm.slane %v338, 0
    %v341 = vsel %vm79, %v332, 0
    %v344 = vsel %vm79, %v333, 0
    %346 = vmatpush.msra.mxu0 0.0
    %347 = vmatpush.msra.mxu0 0.0
    %348 = vmatpush.msra.mxu0 0.0
    %349 = vmatpush.msra.mxu0 0.0
    %350 = vmatpush.msra.mxu0 0.0
    %351 = vmatpush.msra.mxu0 0.0
    %352 = vmatpush.msra.mxu0 0.0
    %353 = vmatpush.msra.mxu0 0.0
    %354 = vmatpush.msra.mxu0 0.0
    %355 = vmatpush.msra.mxu0 0.0
    %356 = vmatpush.msra.mxu0 0.0
    %357 = vmatpush.msra.mxu0 0.0
    %358 = vmatpush.msra.mxu0 %v337
    %359 = vmatpush.msra.mxu0 %v336
    %360 = vmatpush.msra.mxu0 %v335
    %361 = vmatpush.msra.mxu0 %v334
    %362 = vmatmul.f32.gmra.mxu0 %v341
    %v363 = vpop.f32.mrf.mxu0
    %v364 = vadd.f32 %v339, %v363
    %365 = vmatmul.f32.gmra.mxu0 %v344
    %v366 = vpop.f32.mrf.mxu0
    %v367 = vadd.f32 %v339, %v366
    %368 = vdwg.mxu0
    %v369 = vmax.f32 %v364, 0.0
    %v370 = vmax.f32 %v367, 0.0
    %v371 = vld [vmem:[%s2 + $0xc0] sm:$0xff]
    %v372 = vld [vmem:[%s2 + $0xc8] sm:$0xff]
    %v373 = vld [vmem:[%s2 + $0xd0] sm:$0xff]
    %v374 = vld [vmem:[%s2 + $0xd8] sm:$0xff]
    %v375 = vld [vmem:[%s3 + $0x6] sm:$0x1]
    %v376 = vperm.slane %v375, 0
    %v378 = vsel %vm79, %v369, 0
    %v381 = vsel %vm79, %v370, 0
    %383 = vmatpush.msra.mxu0 0.0
    %384 = vmatpush.msra.mxu0 0.0
    %385 = vmatpush.msra.mxu0 0.0
    %386 = vmatpush.msra.mxu0 0.0
    %387 = vmatpush.msra.mxu0 0.0
    %388 = vmatpush.msra.mxu0 0.0
    %389 = vmatpush.msra.mxu0 0.0
    %390 = vmatpush.msra.mxu0 0.0
    %391 = vmatpush.msra.mxu0 0.0
    %392 = vmatpush.msra.mxu0 0.0
    %393 = vmatpush.msra.mxu0 0.0
    %394 = vmatpush.msra.mxu0 0.0
    %395 = vmatpush.msra.mxu0 %v374
    %396 = vmatpush.msra.mxu0 %v373
    %397 = vmatpush.msra.mxu0 %v372
    %398 = vmatpush.msra.mxu0 %v371
    %399 = vmatmul.f32.gmra.mxu0 %v378
    %v400 = vpop.f32.mrf.mxu0
    %v401 = vadd.f32 %v376, %v400
    %402 = vmatmul.f32.gmra.mxu0 %v381
    %v403 = vpop.f32.mrf.mxu0
    %v404 = vadd.f32 %v376, %v403
    %405 = vdwg.mxu0
    %v406 = vadd.f32 %v369, %v401
    %v407 = vadd.f32 %v370, %v404
    %v408 = vsel %vm79, %v406, 0.0
    %409 = vadd.xlane.f32.xlu0 %v408
    %v410 = vpop.xlane.xlu0 %409
    %v411 = vsel %vm79, %v407, 0.0
    %412 = vadd.xlane.f32.xlu0 %v411
    %v413 = vpop.xlane.xlu0 %412
    %v414 = vrcp.pop 32.0
    %v415 = vmul.f32 32.0, %v414
    %v416 = vsub.f32 1.0, %v415
    %v417 = vmul.f32 %v414, %v416
    %v418 = vadd.f32 %v414, %v417
    %vm419 = vweird.f32 %v414
    %v420 = vsel %vm419, %v414, %v418
    %v421 = vmul.f32 %v410, %v420
    %v422 = vmul.f32 %v413, %v420
    %v423 = vmul.f32 %v406, %v406
    %v424 = vmul.f32 %v407, %v407
    %v425 = vsel %vm79, %v423, 0.0
    %426 = vadd.xlane.f32.xlu0 %v425
    %v427 = vpop.xlane.xlu0 %426
    %v428 = vsel %vm79, %v424, 0.0
    %429 = vadd.xlane.f32.xlu0 %v428
    %v430 = vpop.xlane.xlu0 %429
    %v431 = vmul.f32 %v427, %v420
    %v432 = vmul.f32 %v430, %v420
    %v433 = vmul.f32 %v421, %v421
    %v434 = vmul.f32 %v422, %v422
    %v435 = vsub.f32 %v431, %v433
    %v436 = vsub.f32 %v432, %v434
    %v437 = vmax.f32 %v435, 0.0
    %v438 = vmax.f32 %v436, 0.0
    %v439 = vsub.f32 %v406, %v421
    %v440 = vsub.f32 %v407, %v422
    %v441 = vadd.f32 %v437, 1e-05
    %v442 = vadd.f32 %v438, 1e-05
    %v443 = vrsqrt.pop %v441
    %v444 = vmul.f32 %v443, %v441
    %v445 = vmul.f32 %v444, %v443
    %v446 = vmul.f32 0.5, %v445
    %v447 = vsub.f32 1.5, %v446
    %v448 = vmul.f32 %v443, %v447
    %vm449 = vweird.f32 %v441
    %vm450 = vweird.f32 %v443
    %vm451 = vmor %vm449, %vm450
    %v452 = vsel %vm451, %v443, %v448
    %v453 = vrsqrt.pop %v442
    %v454 = vmul.f32 %v453, %v442
    %v455 = vmul.f32 %v454, %v453
    %v456 = vmul.f32 0.5, %v455
    %v457 = vsub.f32 1.5, %v456
    %v458 = vmul.f32 %v453, %v457
    %vm459 = vweird.f32 %v442
    %vm460 = vweird.f32 %v453
    %vm461 = vmor %vm459, %vm460
    %v462 = vsel %vm461, %v453, %v458
    %v463 = vmul.f32 %v439, %v452
    %v464 = vmul.f32 %v440, %v462
    %v465 = vld [vmem:[%s3 + $0x7] sm:$0x1]
    %v466 = vperm.slane %v465, 0
    %v467 = vmul.f32 %v463, %v466
    %v468 = vmul.f32 %v464, %v466
    %v469 = vld [vmem:[%s3 + $0x8] sm:$0x1]
    %v470 = vperm.slane %v469, 0
    %v471 = vadd.f32 %v467, %v470
    %v472 = vadd.f32 %v468, %v470
    %v473 = vld [vmem:[%s2 + $0xe0] sm:$0xff]
    %v474 = vld [vmem:[%s2 + $0xe8] sm:$0xff]
    %v475 = vld [vmem:[%s2 + $0xf0] sm:$0xff]
    %v476 = vld [vmem:[%s2 + $0xf8] sm:$0xff]
    %v477 = vld [vmem:[%s3 + $0x9] sm:$0x1]
    %v478 = vperm.slane %v477, 0
    %v480 = vsel %vm79, %v471, 0
    %v483 = vsel %vm79, %v472, 0
    %485 = vmatpush.msra.mxu0 0.0
    %486 = vmatpush.msra.mxu0 0.0
    %487 = vmatpush.msra.mxu0 0.0
    %488 = vmatpush.msra.mxu0 0.0
    %489 = vmatpush.msra.mxu0 0.0
    %490 = vmatpush.msra.mxu0 0.0
    %491 = vmatpush.msra.mxu0 0.0
    %492 = vmatpush.msra.mxu0 0.0
    %493 = vmatpush.msra.mxu0 0.0
    %494 = vmatpush.msra.mxu0 0.0
    %495 = vmatpush.msra.mxu0 0.0
    %496 = vmatpush.msra.mxu0 0.0
    %497 = vmatpush.msra.mxu0 %v476
    %498 = vmatpush.msra.mxu0 %v475
    %499 = vmatpush.msra.mxu0 %v474
    %500 = vmatpush.msra.mxu0 %v473
    %501 = vmatmul.f32.gmra.mxu0 %v480
    %v502 = vpop.f32.mrf.mxu0
    %v503 = vadd.f32 %v478, %v502
    %504 = vmatmul.f32.gmra.mxu0 %v483
    %v505 = vpop.f32.mrf.mxu0
    %v506 = vadd.f32 %v478, %v505
    %507 = vdwg.mxu0
    %v508 = vmax.f32 %v503, 0.0
    %v509 = vmax.f32 %v506, 0.0
    %v510 = vld [vmem:[%s2 + $0x100] sm:$0xff]
    %v511 = vld [vmem:[%s2 + $0x108] sm:$0xff]
    %v512 = vld [vmem:[%s2 + $0x110] sm:$0xff]
    %v513 = vld [vmem:[%s2 + $0x118] sm:$0xff]
    %v514 = vld [vmem:[%s3 + $0xa] sm:$0x1]
    %v515 = vperm.slane %v514, 0
    %v517 = vsel %vm79, %v508, 0
    %v520 = vsel %vm79, %v509, 0
    %522 = vmatpush.msra.mxu0 0.0
    %523 = vmatpush.msra.mxu0 0.0
    %524 = vmatpush.msra.mxu0 0.0
    %525 = vmatpush.msra.mxu0 0.0
    %526 = vmatpush.msra.mxu0 0.0
    %527 = vmatpush.msra.mxu0 0.0
    %528 = vmatpush.msra.mxu0 0.0
    %529 = vmatpush.msra.mxu0 0.0
    %530 = vmatpush.msra.mxu0 0.0
    %531 = vmatpush.msra.mxu0 0.0
    %532 = vmatpush.msra.mxu0 0.0
    %533 = vmatpush.msra.mxu0 0.0
    %534 = vmatpush.msra.mxu0 %v513
    %535 = vmatpush.msra.mxu0 %v512
    %536 = vmatpush.msra.mxu0 %v511
    %537 = vmatpush.msra.mxu0 %v510
    %538 = vmatmul.f32.gmra.mxu0 %v517
    %v539 = vpop.f32.mrf.mxu0
    %v540 = vadd.f32 %v515, %v539
    %541 = vmatmul.f32.gmra.mxu0 %v520
    %v542 = vpop.f32.mrf.mxu0
    %v543 = vadd.f32 %v515, %v542
    %544 = vdwg.mxu0
    %v545 = vadd.f32 %v471, %v540
    %v546 = vadd.f32 %v472, %v543
    %v547 = vsel %vm79, %v545, 0.0
    %548 = vadd.xlane.f32.xlu0 %v547
    %v549 = vpop.xlane.xlu0 %548
    %v550 = vsel %vm79, %v546, 0.0
    %551 = vadd.xlane.f32.xlu0 %v550
    %v552 = vpop.xlane.xlu0 %551
    %v553 = vmul.f32 %v549, %v420
    %v554 = vmul.f32 %v552, %v420
    %v555 = vmul.f32 %v545, %v545
    %v556 = vmul.f32 %v546, %v546
    %v557 = vsel %vm79, %v555, 0.0
    %558 = vadd.xlane.f32.xlu0 %v557
    %v559 = vpop.xlane.xlu0 %558
    %v560 = vsel %vm79, %v556, 0.0
    %561 = vadd.xlane.f32.xlu0 %v560
    %v562 = vpop.xlane.xlu0 %561
    %v563 = vmul.f32 %v559, %v420
    %v564 = vmul.f32 %v562, %v420
    %v565 = vmul.f32 %v553, %v553
    %v566 = vmul.f32 %v554, %v554
    %v567 = vsub.f32 %v563, %v565
    %v568 = vsub.f32 %v564, %v566
    %v569 = vmax.f32 %v567, 0.0
    %v570 = vmax.f32 %v568, 0.0
    %v571 = vsub.f32 %v545, %v553
    %v572 = vsub.f32 %v546, %v554
    %v573 = vadd.f32 %v569, 1e-05
    %v574 = vadd.f32 %v570, 1e-05
    %v575 = vrsqrt.pop %v573
    %v576 = vmul.f32 %v575, %v573
    %v577 = vmul.f32 %v576, %v575
    %v578 = vmul.f32 0.5, %v577
    %v579 = vsub.f32 1.5, %v578
    %v580 = vmul.f32 %v575, %v579
    %vm581 = vweird.f32 %v573
    %vm582 = vweird.f32 %v575
    %vm583 = vmor %vm581, %vm582
    %v584 = vsel %vm583, %v575, %v580
    %v585 = vrsqrt.pop %v574
    %v586 = vmul.f32 %v585, %v574
    %v587 = vmul.f32 %v586, %v585
    %v588 = vmul.f32 0.5, %v587
    %v589 = vsub.f32 1.5, %v588
    %v590 = vmul.f32 %v585, %v589
    %vm591 = vweird.f32 %v574
    %vm592 = vweird.f32 %v585
    %vm593 = vmor %vm591, %vm592
    %v594 = vsel %vm593, %v585, %v590
    %v595 = vmul.f32 %v571, %v584
    %v596 = vmul.f32 %v572, %v594
    %v597 = vld [vmem:[%s3 + $0xb] sm:$0x1]
    %v598 = vperm.slane %v597, 0
    %v599 = vmul.f32 %v595, %v598
    %v600 = vmul.f32 %v596, %v598
    %v601 = vld [vmem:[%s3 + $0xc] sm:$0x1]
    %v602 = vperm.slane %v601, 0
    %v603 = vadd.f32 %v599, %v602
    %v604 = vadd.f32 %v600, %v602
    %v605 = vld [vmem:[%s2 + $0x120] sm:$0xff]
    %v606 = vld [vmem:[%s2 + $0x128] sm:$0xff]
    %v607 = vld [vmem:[%s2 + $0x130] sm:$0xff]
    %v608 = vld [vmem:[%s2 + $0x138] sm:$0xff]
    %v609 = vld [vmem:[%s3 + $0xd] sm:$0x1]
    %v610 = vperm.slane %v609, 0
    %v612 = vsel %vm79, %v603, 0
    %v615 = vsel %vm79, %v604, 0
    %617 = vmatpush.msra.mxu0 0.0
    %618 = vmatpush.msra.mxu0 0.0
    %619 = vmatpush.msra.mxu0 0.0
    %620 = vmatpush.msra.mxu0 0.0
    %621 = vmatpush.msra.mxu0 0.0
    %622 = vmatpush.msra.mxu0 0.0
    %623 = vmatpush.msra.mxu0 0.0
    %624 = vmatpush.msra.mxu0 0.0
    %625 = vmatpush.msra.mxu0 0.0
    %626 = vmatpush.msra.mxu0 0.0
    %627 = vmatpush.msra.mxu0 0.0
    %628 = vmatpush.msra.mxu0 0.0
    %629 = vmatpush.msra.mxu0 %v608
    %630 = vmatpush.msra.mxu0 %v607
    %631 = vmatpush.msra.mxu0 %v606
    %632 = vmatpush.msra.mxu0 %v605
    %633 = vmatmul.f32.gmra.mxu0 %v612
    %v634 = vpop.f32.mrf.mxu0
    %v635 = vadd.f32 %v610, %v634
    %636 = vmatmul.f32.gmra.mxu0 %v615
    %v637 = vpop.f32.mrf.mxu0
    %v638 = vadd.f32 %v610, %v637
    %639 = vdwg.mxu0
    %v640 = vadd.f32 %v603, %v635
    %v641 = vadd.f32 %v604, %v638
    %v642 = vsel %vm79, %v640, 0.0
    %643 = vadd.xlane.f32.xlu0 %v642
    %v644 = vpop.xlane.xlu0 %643
    %v645 = vsel %vm79, %v641, 0.0
    %646 = vadd.xlane.f32.xlu0 %v645
    %v647 = vpop.xlane.xlu0 %646
    %v648 = vmul.f32 %v644, %v420
    %v649 = vmul.f32 %v647, %v420
    %v650 = vmul.f32 %v640, %v640
    %v651 = vmul.f32 %v641, %v641
    %v652 = vsel %vm79, %v650, 0.0
    %653 = vadd.xlane.f32.xlu0 %v652
    %v654 = vpop.xlane.xlu0 %653
    %v655 = vsel %vm79, %v651, 0.0
    %656 = vadd.xlane.f32.xlu0 %v655
    %v657 = vpop.xlane.xlu0 %656
    %v658 = vmul.f32 %v654, %v420
    %v659 = vmul.f32 %v657, %v420
    %v660 = vmul.f32 %v648, %v648
    %v661 = vmul.f32 %v649, %v649
    %v662 = vsub.f32 %v658, %v660
    %v663 = vsub.f32 %v659, %v661
    %v664 = vmax.f32 %v662, 0.0
    %v665 = vmax.f32 %v663, 0.0
    %v666 = vsub.f32 %v640, %v648
    %v667 = vsub.f32 %v641, %v649
    %v668 = vadd.f32 %v664, 1e-05
    %v669 = vadd.f32 %v665, 1e-05
    %v670 = vrsqrt.pop %v668
    %v671 = vmul.f32 %v670, %v668
    %v672 = vmul.f32 %v671, %v670
    %v673 = vmul.f32 0.5, %v672
    %v674 = vsub.f32 1.5, %v673
    %v675 = vmul.f32 %v670, %v674
    %vm676 = vweird.f32 %v668
    %vm677 = vweird.f32 %v670
    %vm678 = vmor %vm676, %vm677
    %v679 = vsel %vm678, %v670, %v675
    %v680 = vrsqrt.pop %v669
    %v681 = vmul.f32 %v680, %v669
    %v682 = vmul.f32 %v681, %v680
    %v683 = vmul.f32 0.5, %v682
    %v684 = vsub.f32 1.5, %v683
    %v685 = vmul.f32 %v680, %v684
    %vm686 = vweird.f32 %v669
    %vm687 = vweird.f32 %v680
    %vm688 = vmor %vm686, %vm687
    %v689 = vsel %vm688, %v680, %v685
    %v690 = vmul.f32 %v666, %v679
    %v691 = vmul.f32 %v667, %v689
    %v692 = vld [vmem:[%s3 + $0xe] sm:$0x1]
    %v693 = vperm.slane %v692, 0
    %v694 = vmul.f32 %v690, %v693
    %v695 = vmul.f32 %v691, %v693
    %v696 = vld [vmem:[%s3 + $0xf] sm:$0x1]
    %v697 = vperm.slane %v696, 0
    %v698 = vadd.f32 %v694, %v697
    %v699 = vadd.f32 %v695, %v697
    %v700 = vld [vmem:[%s2 + $0x140] sm:$0xff]
    %v701 = vld [vmem:[%s2 + $0x148] sm:$0xff]
    %v702 = vld [vmem:[%s2 + $0x150] sm:$0xff]
    %v703 = vld [vmem:[%s2 + $0x158] sm:$0xff]
    %v704 = vld [vmem:[%s3 + $0x10] sm:$0x1]
    %v705 = vperm.slane %v704, 0
    %v707 = vsel %vm79, %v698, 0
    %v710 = vsel %vm79, %v699, 0
    %712 = vmatpush.msra.mxu0 0.0
    %713 = vmatpush.msra.mxu0 0.0
    %714 = vmatpush.msra.mxu0 0.0
    %715 = vmatpush.msra.mxu0 0.0
    %716 = vmatpush.msra.mxu0 0.0
    %717 = vmatpush.msra.mxu0 0.0
    %718 = vmatpush.msra.mxu0 0.0
    %719 = vmatpush.msra.mxu0 0.0
    %720 = vmatpush.msra.mxu0 0.0
    %721 = vmatpush.msra.mxu0 0.0
    %722 = vmatpush.msra.mxu0 0.0
    %723 = vmatpush.msra.mxu0 0.0
    %724 = vmatpush.msra.mxu0 %v703
    %725 = vmatpush.msra.mxu0 %v702
    %726 = vmatpush.msra.mxu0 %v701
    %727 = vmatpush.msra.mxu0 %v700
    %728 = vmatmul.f32.gmra.mxu0 %v707
    %v729 = vpop.f32.mrf.mxu0
    %v730 = vadd.f32 %v705, %v729
    %731 = vmatmul.f32.gmra.mxu0 %v710
    %v732 = vpop.f32.mrf.mxu0
    %v733 = vadd.f32 %v705, %v732
    %734 = vdwg.mxu0
    %v735 = vmax.f32 %v730, 0.0
    %v736 = vmax.f32 %v733, 0.0
    %v737 = vld [vmem:[%s2 + $0x160] sm:$0xff]
    %v738 = vld [vmem:[%s2 + $0x168] sm:$0xff]
    %v739 = vld [vmem:[%s2 + $0x170] sm:$0xff]
    %v740 = vld [vmem:[%s2 + $0x178] sm:$0xff]
    %v741 = vld [vmem:[%s3 + $0x11] sm:$0x1]
    %v742 = vperm.slane %v741, 0
    %v744 = vsel %vm79, %v735, 0
    %v747 = vsel %vm79, %v736, 0
    %749 = vmatpush.msra.mxu0 0.0
    %750 = vmatpush.msra.mxu0 0.0
    %751 = vmatpush.msra.mxu0 0.0
    %752 = vmatpush.msra.mxu0 0.0
    %753 = vmatpush.msra.mxu0 0.0
    %754 = vmatpush.msra.mxu0 0.0
    %755 = vmatpush.msra.mxu0 0.0
    %756 = vmatpush.msra.mxu0 0.0
    %757 = vmatpush.msra.mxu0 0.0
    %758 = vmatpush.msra.mxu0 0.0
    %759 = vmatpush.msra.mxu0 0.0
    %760 = vmatpush.msra.mxu0 0.0
    %761 = vmatpush.msra.mxu0 %v740
    %762 = vmatpush.msra.mxu0 %v739
    %763 = vmatpush.msra.mxu0 %v738
    %764 = vmatpush.msra.mxu0 %v737
    %765 = vmatmul.f32.gmra.mxu0 %v744
    %v766 = vpop.f32.mrf.mxu0
    %v767 = vadd.f32 %v742, %v766
    %768 = vmatmul.f32.gmra.mxu0 %v747
    %v769 = vpop.f32.mrf.mxu0
    %v770 = vadd.f32 %v742, %v769
    %771 = vdwg.mxu0
    %v772 = vadd.f32 %v698, %v767
    %v773 = vadd.f32 %v699, %v770
    %v774 = vsel %vm79, %v772, 0.0
    %775 = vadd.xlane.f32.xlu0 %v774
    %v776 = vpop.xlane.xlu0 %775
    %v777 = vsel %vm79, %v773, 0.0
    %778 = vadd.xlane.f32.xlu0 %v777
    %v779 = vpop.xlane.xlu0 %778
    %v780 = vmul.f32 %v776, %v420
    %v781 = vmul.f32 %v779, %v420
    %v782 = vmul.f32 %v772, %v772
    %v783 = vmul.f32 %v773, %v773
    %v784 = vsel %vm79, %v782, 0.0
    %785 = vadd.xlane.f32.xlu0 %v784
    %v786 = vpop.xlane.xlu0 %785
    %v787 = vsel %vm79, %v783, 0.0
    %788 = vadd.xlane.f32.xlu0 %v787
    %v789 = vpop.xlane.xlu0 %788
    %v790 = vmul.f32 %v786, %v420
    %v791 = vmul.f32 %v789, %v420
    %v792 = vmul.f32 %v780, %v780
    %v793 = vmul.f32 %v781, %v781
    %v794 = vsub.f32 %v790, %v792
    %v795 = vsub.f32 %v791, %v793
    %v796 = vmax.f32 %v794, 0.0
    %v797 = vmax.f32 %v795, 0.0
    %v798 = vsub.f32 %v772, %v780
    %v799 = vsub.f32 %v773, %v781
    %v800 = vadd.f32 %v796, 1e-05
    %v801 = vadd.f32 %v797, 1e-05
    %v802 = vrsqrt.pop %v800
    %v803 = vmul.f32 %v802, %v800
    %v804 = vmul.f32 %v803, %v802
    %v805 = vmul.f32 0.5, %v804
    %v806 = vsub.f32 1.5, %v805
    %v807 = vmul.f32 %v802, %v806
    %vm808 = vweird.f32 %v800
    %vm809 = vweird.f32 %v802
    %vm810 = vmor %vm808, %vm809
    %v811 = vsel %vm810, %v802, %v807
    %v812 = vrsqrt.pop %v801
    %v813 = vmul.f32 %v812, %v801
    %v814 = vmul.f32 %v813, %v812
    %v815 = vmul.f32 0.5, %v814
    %v816 = vsub.f32 1.5, %v815
    %v817 = vmul.f32 %v812, %v816
    %vm818 = vweird.f32 %v801
    %vm819 = vweird.f32 %v812
    %vm820 = vmor %vm818, %vm819
    %v821 = vsel %vm820, %v812, %v817
    %v822 = vmul.f32 %v798, %v811
    %v823 = vmul.f32 %v799, %v821
    %v824 = vld [vmem:[%s3 + $0x12] sm:$0x1]
    %v825 = vperm.slane %v824, 0
    %v826 = vmul.f32 %v822, %v825
    %v827 = vmul.f32 %v823, %v825
    %v828 = vld [vmem:[%s3 + $0x13] sm:$0x1]
    %v829 = vperm.slane %v828, 0
    %v830 = vadd.f32 %v826, %v829
    %v831 = vadd.f32 %v827, %v829
    %v832 = vld [vmem:[%s4] sm:$0xff]
    %v833 = vld [vmem:[%s4 + $0x8] sm:$0xff]
    %v834 = vld [vmem:[%s4 + $0x10] sm:$0xff]
    %v835 = vld [vmem:[%s4 + $0x18] sm:$0xff]
    %v836 = vld [vmem:[%s5] sm:$0x1]
    %v838 = vperm.slane %v836, 0
    %v841 = vsel %vm79, %v830, 0
    %v844 = vsel %vm79, %v831, 0
    %846 = vmatpush.msra.mxu0 0.0
    %847 = vmatpush.msra.mxu0 0.0
    %848 = vmatpush.msra.mxu0 0.0
    %849 = vmatpush.msra.mxu0 0.0
    %850 = vmatpush.msra.mxu0 0.0
    %851 = vmatpush.msra.mxu0 0.0
    %852 = vmatpush.msra.mxu0 0.0
    %853 = vmatpush.msra.mxu0 0.0
    %854 = vmatpush.msra.mxu0 0.0
    %855 = vmatpush.msra.mxu0 0.0
    %856 = vmatpush.msra.mxu0 0.0
    %857 = vmatpush.msra.mxu0 0.0
    %858 = vmatpush.msra.mxu0 %v835
    %859 = vmatpush.msra.mxu0 %v834
    %860 = vmatpush.msra.mxu0 %v833
    %861 = vmatpush.msra.mxu0 %v832
    %862 = vmatmul.f32.gmra.mxu0 %v841
    %v863 = vpop.f32.mrf.mxu0
    %v864 = vadd.f32 %v838, %v863
    %865 = vmatmul.f32.gmra.mxu0 %v844
    %v866 = vpop.f32.mrf.mxu0
    %v867 = vadd.f32 %v838, %v866
    %868 = vdwg.mxu0
    %869 = vst.msk [vmem:[#allocation2] sm:$0xff] %vm122, %v864
    %870 = vst.msk [vmem:[#allocation2 + $0x8] sm:$0xff] %vm122, %v867
    // Predicated region
    $region26: #{tpu_custom_call.1} parent=1 // pred_check
      _
    $region27: #{tpu_custom_call.1} parent=1 // pred_check_branch
      %872 = sbr.rel (0) target = $region29
    $region28: #{tpu_custom_call.1} parent=1 // pred_region
      %874 = vsyncadd [#allocation3], 0
      %s875 = sshll.u32 [#allocation2], 4
      %s876 = int_to_ptr.vmem [resolvable:$true] %s875
      %s877 = sshll.u32 %s6, 4
      %s878 = int_to_ptr.hbm [resolvable:$true] %s877
      %883 = dma.vmem_to_hbm [thread:$0]  %s876, 256, %s878, [#allocation3], 128, 128, 8
    $region29: #{tpu_custom_call.1} parent=1 // pred_fallthru
      _
    // Predicated region
    $region30: #{tpu_custom_call.1} parent=1 // pred_check
      _
    $region31: #{tpu_custom_call.1} parent=1 // pred_check_branch
      %885 = sbr.rel (0) target = $region33
    $region32: #{tpu_custom_call.1} parent=1 // pred_region
      %887 = dma.done [#allocation3], 256
    $region33: #{tpu_custom_call.1} parent=1 // pred_fallthru
      _
    %888 = vsyncpa [#allocation3], 1

</llo_original>
